<compile_context>
chip_gen: v7x
topology: tpu7x:2x2x1
jax: 0.10.0
libtpu: 0.0.40
codegen_flags: <defaults>
</compile_context>

<pallas_src>
import jax
import jax.numpy as jnp
from jax.experimental import pallas as pl
from jax.experimental.pallas import tpu as pltpu

NUM_POS_FEATS = 32          # num_pos_feats for the small test (PyTorch default is 128)
MAX_POS = 50                # nn.Embedding(50, num_pos_feats)


def _pos_embed_kernel(top_ref, bot_ref, out_ref):
    """One lane-block of the channel-first position-embedding slab.

    top_ref: (F,  L)   top[f, i*W + j] = col_embed.weight[j, f]   (this lane block)
    bot_ref: (F,  L)   bot[f, i*W + j] = row_embed.weight[i, f]   (this lane block)
    out_ref: (2F, L)   channel-first output slab block
    Two half-height, lane-dense stores (no concat => no extra VMEM copy).
    """
    F = top_ref.shape[0]
    out_ref[:F, :] = top_ref[...]
    out_ref[F:, :] = bot_ref[...]


def _choose_row_tile(H, W, F, itemsize, budget_bytes=8 << 20):
    """Rows per output block.

    Prefer the full slab (single grid step).  If that ever exceeded the VMEM
    budget (impossible with 50-row embedding tables), fall back to the largest
    divisor of H whose block fits and whose lane width is a multiple of 128 so
    stores stay unmasked and the BlockSpec (8,128) rule is satisfied.
    """
    if 2 * F * H * W * itemsize <= budget_bytes:
        return H
    for th in range(H - 1, 0, -1):
        if (H % th == 0 and (th * W) % 128 == 0
                and 2 * F * th * W * itemsize <= budget_bytes):
            return th
    return H  # unreachable for nn.Embedding(50, ...)-sized tables


def position_embedding_learned(x, row_weight, col_weight, out_dtype=None):
    """Pallas implementation of PositionEmbeddingLearned.forward.

    x:          (B, C, H, W)   -- only its shape is used (as in PyTorch)
    row_weight: (50, F)        -- row_embed.weight
    col_weight: (50, F)        -- col_embed.weight
    out_dtype:  optional output dtype (e.g. jnp.bfloat16) to halve HBM writeback
    returns:    (B, 2F, H, W)
    """
    B = x.shape[0]
    H, W = x.shape[-2], x.shape[-1]
    F = row_weight.shape[-1]
    assert col_weight.shape[-1] == F, "row/col embeddings must share num_pos_feats"
    assert H <= row_weight.shape[0] and W <= col_weight.shape[0], (
        "H/W exceed the embedding table size (nn.Embedding(50, ...))")
    dtype = jnp.dtype(out_dtype) if out_dtype is not None else jnp.dtype(row_weight.dtype)

    # Embedding lookup with arange indices == leading-row slice of each table
    # (tables are a few KiB; all of this is cheap one-shot XLA glue).
    x_emb = col_weight[:W].astype(dtype)        # (W, F)
    y_emb = row_weight[:H].astype(dtype)        # (H, F)

    # Batch-invariant channel-first half-slabs, flattened over space:
    #   top[f, i*W + j] = col_embed[j, f]     bot[f, i*W + j] = row_embed[i, f]
    top = jnp.broadcast_to(x_emb.T[:, None, :], (F, H, W)).reshape(F, H * W)
    bot = jnp.broadcast_to(y_emb.T[:, :, None], (F, H, W)).reshape(F, H * W)

    th = _choose_row_tile(H, W, F, dtype.itemsize)
    n_h = H // th                                # == 1 at all realistic sizes
    lanes = th * W
    slab_bytes = 2 * F * H * W * dtype.itemsize  # one read + one write of the slab

    pos_flat = pl.pallas_call(
        _pos_embed_kernel,
        out_shape=jax.ShapeDtypeStruct((2 * F, H * W), dtype),
        grid=(n_h,),
        in_specs=[pl.BlockSpec((F, lanes), lambda t: (0, t)),
                  pl.BlockSpec((F, lanes), lambda t: (0, t))],
        out_specs=pl.BlockSpec((2 * F, lanes), lambda t: (0, t)),
        compiler_params=pltpu.CompilerParams(dimension_semantics=("parallel",)),
        cost_estimate=pl.CostEstimate(flops=0, transcendentals=0,
                                      bytes_accessed=2 * slab_bytes),
    )(top, bot)

    # Contiguous minor-dim split (layout-preserving) + batch broadcast OUTSIDE
    # the kernel: the kernel never writes B identical copies.
    # TODO(synk): fuse this broadcast into the consumer's q/k add so the B
    # replicated copies are never materialized in HBM at all.
    return jnp.broadcast_to(pos_flat.reshape(1, 2 * F, H, W), (B, 2 * F, H, W))


def _reference(x, row_weight, col_weight):
    """Pure-JAX reference mirroring the PyTorch forward exactly."""
    B = x.shape[0]
    H, W = x.shape[-2], x.shape[-1]
    x_emb = col_weight[jnp.arange(W)]                       # (W, F)
    y_emb = row_weight[jnp.arange(H)]                       # (H, F)
    pos = jnp.concatenate(
        [jnp.broadcast_to(x_emb[None, :, :], (H, W, x_emb.shape[-1])),
         jnp.broadcast_to(y_emb[:, None, :], (H, W, y_emb.shape[-1]))],
        axis=-1)                                            # (H, W, 2F)
    pos = jnp.transpose(pos, (2, 0, 1))[None]               # (1, 2F, H, W)
    return jnp.broadcast_to(pos, (B,) + pos.shape[1:])


if __name__ == "__main__":
    key = jax.random.PRNGKey(0)
    k_x, k_row, k_col = jax.random.split(key, 3)

    B, C, H, W = 2, 4, 16, 16
    x = jax.random.normal(k_x, (B, C, H, W), dtype=jnp.float32)

    # nn.init.uniform_ -> U[0, 1) on the (50, F) embedding tables.
    row_weight = jax.random.uniform(k_row, (MAX_POS, NUM_POS_FEATS), dtype=jnp.float32)
    col_weight = jax.random.uniform(k_col, (MAX_POS, NUM_POS_FEATS), dtype=jnp.float32)

    pos = position_embedding_learned(x, row_weight, col_weight)
    pos = jax.block_until_ready(pos)

    ref = _reference(x, row_weight, col_weight)
    assert pos.shape == (B, 2 * NUM_POS_FEATS, H, W), pos.shape
    assert jnp.allclose(pos, ref), "mismatch vs reference"

    print("KERNEL_OK")
</pallas_src>

<mosaic_0001>
module attributes {stable_mosaic.version = 11 : i64} {
  func.func @_pos_embed_kernel(%arg0: i32, %arg1: memref<32x256xf32, #tpu.memory_space<vmem>>, %arg2: memref<32x256xf32, #tpu.memory_space<vmem>>, %arg3: memref<64x256xf32, #tpu.memory_space<vmem>>) attributes {dimension_semantics = [#tpu.dimension_semantics<parallel>], iteration_bounds = array<i64: 1>, scalar_prefetch = 0 : i64, scratch_operands = 0 : i64, tpu.core_type = #tpu.core_type<tc>, window_params = [{transform_indices = @transform_0, window_bounds = array<i64: 32, 256>}, {transform_indices = @transform_1, window_bounds = array<i64: 32, 256>}, {transform_indices = @transform_2, window_bounds = array<i64: 64, 256>}]} {
    %c0 = arith.constant 0 : index
    %c0_0 = arith.constant 0 : index
    %0 = vector.load %arg1[%c0, %c0_0] : memref<32x256xf32, #tpu.memory_space<vmem>>, vector<32x256xf32>
    %c0_1 = arith.constant 0 : index
    %c0_2 = arith.constant 0 : index
    %1 = vector.load %arg3[%c0_1, %c0_2] : memref<64x256xf32, #tpu.memory_space<vmem>>, vector<32x256xf32>
    tpu.vector_store %arg3[%c0_1, %c0_2], %0 {strides = array<i32>} : memref<64x256xf32, #tpu.memory_space<vmem>>, vector<32x256xf32>,
    %c0_3 = arith.constant 0 : index
    %c0_4 = arith.constant 0 : index
    %2 = vector.load %arg2[%c0_3, %c0_4] : memref<32x256xf32, #tpu.memory_space<vmem>>, vector<32x256xf32>
    %c32 = arith.constant 32 : index
    %c0_5 = arith.constant 0 : index
    %3 = vector.load %arg3[%c32, %c0_5] : memref<64x256xf32, #tpu.memory_space<vmem>>, vector<32x256xf32>
    tpu.vector_store %arg3[%c32, %c0_5], %2 {strides = array<i32>} : memref<64x256xf32, #tpu.memory_space<vmem>>, vector<32x256xf32>,
    return
  }
  func.func @transform_0(%arg0: i32) -> (i32, i32) {
    %c0_i32 = arith.constant 0 : i32
    %c0_i32_0 = arith.constant 0 : i32
    return %c0_i32, %arg0 : i32, i32
  }
  func.func @transform_1(%arg0: i32) -> (i32, i32) {
    %c0_i32 = arith.constant 0 : i32
    %c0_i32_0 = arith.constant 0 : i32
    return %c0_i32, %arg0 : i32, i32
  }
  func.func @transform_2(%arg0: i32) -> (i32, i32) {
    %c0_i32 = arith.constant 0 : i32
    %c0_i32_0 = arith.constant 0 : i32
    return %c0_i32, %arg0 : i32, i32
  }
}

</mosaic_0001>

<llo_original>
// kernel: tpu_custom_call.1
$region0: #{tpu_custom_call.1}
  #allocation0 [shape = 'u32[]', space=smem, size = 0x4, offset = 0x4, fixed_abs, tag = 'smem constant byte address 0x4 - core index']
  #allocation1 [shape = 'u32[144,128]{1,0:T(1,128)}', space=vmem, size = 0x12000, scoped, tag = 'internal scratch']
  %s0 = inlined_call_operand.hbm [shape: f32[32,256], index: 0, kind: input, shape index: {}]
  %s1 = inlined_call_operand.hbm [shape: f32[32,256], index: 1, kind: input, shape index: {}]
  %s2 = inlined_call_operand.hbm [shape: f32[64,256], index: 2, kind: output, shape index: {}]
  %s3 = sld [smem:[#allocation0]]
  $region26: #{tpu_custom_call.1} parent=0
    _
  %s5 = ssub.s32 1, %s3
  %s6 = scalar_select 0, %s5, %s3
  $region1: #{tpu_custom_call.1} parent=0
    #allocation2 [shape = 'u8[32768]{0}', space=vmem, size = 0x8000, scoped, tag = 'input window, operand 0, single buffered']
    #allocation3 [shape = 's32[1]{0}', space=sflag, size = 0x4, scoped, tag = 'scoped memory for tpu_custom_call.1']
    #allocation4 [shape = 's32[1]{0}', space=sflag, size = 0x4, scoped, tag = 'scoped memory for tpu_custom_call.1']
    #allocation5 [shape = 'u8[32768]{0}', space=vmem, size = 0x8000, scoped, tag = 'input window, operand 1, single buffered']
    #allocation6 [shape = 's32[1]{0}', space=sflag, size = 0x4, scoped, tag = 'scoped memory for tpu_custom_call.1']
    #allocation7 [shape = 'u8[65536]{0}', space=vmem, size = 0x10000, scoped, tag = 'output window, operand 0, single buffered']
    %7 = vsyncpa [#allocation3], 0
    %8 = vsyncpa [#allocation6], 0
    %9 = vsyncpa [#allocation4], 0
    // Predicated region
    $region2: #{tpu_custom_call.1} parent=1 // pred_check
      _
    $region3: #{tpu_custom_call.1} parent=1 // pred_check_branch
      %11 = sbr.rel (0) target = $region5
    $region4: #{tpu_custom_call.1} parent=1 // pred_region
      %s13 = ssub.s32 1024, 1024
      %14 = vsyncadd [#allocation3], %s13
      %s15 = sshll.u32 [#allocation2], 4
      %s16 = int_to_ptr.vmem [resolvable:$true] %s15
      %21 = dma.hbm_to_vmem [thread:$0]  %s0, 1024, %s16, [#allocation3], 256, 256, 16
    $region5: #{tpu_custom_call.1} parent=1 // pred_fallthru
      _
    // Predicated region
    $region6: #{tpu_custom_call.1} parent=1 // pred_check
      _
    $region7: #{tpu_custom_call.1} parent=1 // pred_check_branch
      %23 = sbr.rel (0) target = $region9
    $region8: #{tpu_custom_call.1} parent=1 // pred_region
      %s25 = ssub.s32 1024, 1024
      %26 = vsyncadd [#allocation6], %s25
      %s27 = sshll.u32 [#allocation5], 4
      %s28 = int_to_ptr.vmem [resolvable:$true] %s27
      %33 = dma.hbm_to_vmem [thread:$0]  %s1, 1024, %s28, [#allocation6], 256, 256, 16
    $region9: #{tpu_custom_call.1} parent=1 // pred_fallthru
      _
    // Predicated region
    $region10: #{tpu_custom_call.1} parent=1 // pred_check
      _
    $region11: #{tpu_custom_call.1} parent=1 // pred_check_branch
      %35 = sbr.rel (0) target = $region13
    $region12: #{tpu_custom_call.1} parent=1 // pred_region
      %36 = dma.done [#allocation3], 1024
    $region13: #{tpu_custom_call.1} parent=1 // pred_fallthru
      _
    // Predicated region
    $region14: #{tpu_custom_call.1} parent=1 // pred_check
      _
    $region15: #{tpu_custom_call.1} parent=1 // pred_check_branch
      %38 = sbr.rel (0) target = $region17
    $region16: #{tpu_custom_call.1} parent=1 // pred_region
      %39 = dma.done [#allocation6], 1024
    $region17: #{tpu_custom_call.1} parent=1 // pred_fallthru
      _
    %v40 = vld [vmem:[#allocation2] sm:$0xff]
    %v41 = vld [vmem:[#allocation2 + $0x8] sm:$0xff]
    %v42 = vld [vmem:[#allocation2 + $0x10] sm:$0xff]
    %v43 = vld [vmem:[#allocation2 + $0x18] sm:$0xff]
    %v44 = vld [vmem:[#allocation2 + $0x20] sm:$0xff]
    %v45 = vld [vmem:[#allocation2 + $0x28] sm:$0xff]
    %v46 = vld [vmem:[#allocation2 + $0x30] sm:$0xff]
    %v47 = vld [vmem:[#allocation2 + $0x38] sm:$0xff]
    %48 = vst [vmem:[#allocation7] sm:$0xff] %v40
    %49 = vst [vmem:[#allocation7 + $0x8] sm:$0xff] %v41
    %50 = vst [vmem:[#allocation7 + $0x10] sm:$0xff] %v42
    %51 = vst [vmem:[#allocation7 + $0x18] sm:$0xff] %v43
    %52 = vst [vmem:[#allocation7 + $0x20] sm:$0xff] %v44
    %53 = vst [vmem:[#allocation7 + $0x28] sm:$0xff] %v45
    %54 = vst [vmem:[#allocation7 + $0x30] sm:$0xff] %v46
    %55 = vst [vmem:[#allocation7 + $0x38] sm:$0xff] %v47
    %v56 = vld [vmem:[#allocation5] sm:$0xff]
    %v57 = vld [vmem:[#allocation5 + $0x8] sm:$0xff]
    %v58 = vld [vmem:[#allocation5 + $0x10] sm:$0xff]
    %v59 = vld [vmem:[#allocation5 + $0x18] sm:$0xff]
    %v60 = vld [vmem:[#allocation5 + $0x20] sm:$0xff]
    %v61 = vld [vmem:[#allocation5 + $0x28] sm:$0xff]
    %v62 = vld [vmem:[#allocation5 + $0x30] sm:$0xff]
    %v63 = vld [vmem:[#allocation5 + $0x38] sm:$0xff]
    %64 = vst [vmem:[#allocation7 + $0x40] sm:$0xff] %v56
    %65 = vst [vmem:[#allocation7 + $0x48] sm:$0xff] %v57
    %66 = vst [vmem:[#allocation7 + $0x50] sm:$0xff] %v58
    %67 = vst [vmem:[#allocation7 + $0x58] sm:$0xff] %v59
    %68 = vst [vmem:[#allocation7 + $0x60] sm:$0xff] %v60
    %69 = vst [vmem:[#allocation7 + $0x68] sm:$0xff] %v61
    %70 = vst [vmem:[#allocation7 + $0x70] sm:$0xff] %v62
    %71 = vst [vmem:[#allocation7 + $0x78] sm:$0xff] %v63
    // Predicated region
    $region18: #{tpu_custom_call.1} parent=1 // pred_check
      _
    $region19: #{tpu_custom_call.1} parent=1 // pred_check_branch
      %73 = sbr.rel (0) target = $region21
    $region20: #{tpu_custom_call.1} parent=1 // pred_region
      %s75 = ssub.s32 2048, 2048
      %76 = vsyncadd [#allocation4], %s75
      %s77 = sshll.u32 [#allocation7], 4
      %s78 = int_to_ptr.vmem [resolvable:$true] %s77
      %83 = dma.vmem_to_hbm [thread:$0]  %s78, 2048, %s2, [#allocation4], 256, 256, 16
    $region21: #{tpu_custom_call.1} parent=1 // pred_fallthru
      _
    // Predicated region
    $region22: #{tpu_custom_call.1} parent=1 // pred_check
      _
    $region23: #{tpu_custom_call.1} parent=1 // pred_check_branch
      %85 = sbr.rel (0) target = $region25
    $region24: #{tpu_custom_call.1} parent=1 // pred_region
      %86 = dma.done [#allocation4], 2048
    $region25: #{tpu_custom_call.1} parent=1 // pred_fallthru
      _
    %87 = vsyncpa [#allocation3], 1
    %88 = vsyncpa [#allocation6], 1
    %89 = vsyncpa [#allocation4], 1

</llo_original>
